<compile_context>
chip_gen: v7x
topology: tpu7x:2x2x1
jax: 0.10.0
libtpu: 0.0.40
codegen_flags: <defaults>
</compile_context>

<pallas_src>
import math

import jax
import jax.numpy as jnp
from jax.experimental import pallas as pl
from jax.experimental.pallas import tpu as pltpu


_INV_SQRT2 = 1.0 / math.sqrt(2.0)
_INV_SQRT_2PI = 1.0 / math.sqrt(2.0 * math.pi)


def _grad_gelu_kernel(x_ref, o_ref):
    # load in the wire dtype, do all math in f32 (registers only)
    x = x_ref[...].astype(jnp.float32)
    cdf = 0.5 + 0.5 * jax.lax.erf(x * _INV_SQRT2)          # VPU polynomial
    pdf_x = x * (_INV_SQRT_2PI * jnp.exp(-0.5 * x * x))    # exp -> EUP slot
    o_ref[...] = (cdf + pdf_x).astype(o_ref.dtype)


def grad_gelu(x, *, target_block_bytes=2 << 20):
    """Elementwise Phi(x) + x*phi(x) computed in a Pallas TPU kernel."""
    orig_shape = x.shape
    dtype = x.dtype
    n = x.size
    lanes = 128

    flat = x.reshape(-1)
    # pad only if the flat length is not lane-aligned
    n_pad = (-n) % lanes
    if n_pad:
        flat = jnp.pad(flat, (0, n_pad))
    rows = flat.size // lanes
    slab = flat.reshape(rows, lanes)  # layout plumbing, not compute

    # sublane packing: f32 -> 8, bf16/f16 -> 16, int8/fp8 -> 32
    itemsize = jnp.dtype(dtype).itemsize
    sub = max(8, 32 // max(itemsize, 1))

    # ~target_block_bytes per buffer regardless of dtype
    block_rows = max(sub, target_block_bytes // (lanes * itemsize))

    br = min(block_rows, rows)
    if br != rows:
        # block smaller than the array: must be a multiple of the sublane pack
        br = max((br // sub) * sub, sub)
    # else: full-extent block along rows is always legal

    grid = (pl.cdiv(rows, br),)  # ragged last block is padded by Pallas

    out = pl.pallas_call(
        _grad_gelu_kernel,
        out_shape=jax.ShapeDtypeStruct((rows, lanes), dtype),
        grid_spec=pltpu.PrefetchScalarGridSpec(
            num_scalar_prefetch=0,
            grid=grid,
            in_specs=[pl.BlockSpec((br, lanes), lambda i: (i, 0))],
            out_specs=pl.BlockSpec((br, lanes), lambda i: (i, 0)),
        ),
        compiler_params=pltpu.CompilerParams(
            dimension_semantics=("parallel",),
        ),
    )(slab)

    out_flat = out.reshape(-1)
    if n_pad:
        out_flat = out_flat[:n]
    return out_flat.reshape(orig_shape)


if __name__ == "__main__":
    key = jax.random.PRNGKey(0)
    # NCHW-style input, consistent with a typical conv-net activation
    x = jax.random.normal(key, (2, 4, 16, 16), dtype=jnp.float32)

    y = grad_gelu(x)
    jax.block_until_ready(y)

    # reference check in plain JAX
    cdf_ref = 0.5 * (1.0 + jax.lax.erf(x / jnp.sqrt(2.0)))
    pdf_ref = jnp.exp(-0.5 * x * x) / jnp.sqrt(2.0 * jnp.pi)
    y_ref = cdf_ref + x * pdf_ref
    assert jnp.allclose(y, y_ref, atol=1e-5, rtol=1e-5), "mismatch vs reference"

    print("KERNEL_OK")
</pallas_src>

<mosaic_0001>
module attributes {stable_mosaic.version = 11 : i64} {
  func.func @_grad_gelu_kernel(%arg0: i32, %arg1: memref<16x128xf32, #tpu.memory_space<vmem>>, %arg2: memref<16x128xf32, #tpu.memory_space<vmem>>) attributes {dimension_semantics = [#tpu.dimension_semantics<parallel>], iteration_bounds = array<i64: 1>, scalar_prefetch = 0 : i64, scratch_operands = 0 : i64, tpu.core_type = #tpu.core_type<tc>, window_params = [{transform_indices = @transform_0, window_bounds = array<i64: 16, 128>}, {transform_indices = @transform_1, window_bounds = array<i64: 16, 128>}]} {
    %c0 = arith.constant 0 : index
    %c0_0 = arith.constant 0 : index
    %0 = vector.load %arg1[%c0, %c0_0] : memref<16x128xf32, #tpu.memory_space<vmem>>, vector<16x128xf32>
    %cst = arith.constant 0.707106769 : f32
    %1 = vector.broadcast %cst : f32 to vector<16x128xf32>
    %2 = arith.mulf %0, %1 : vector<16x128xf32>
    %3 = math.erf %2 : vector<16x128xf32>
    %cst_1 = arith.constant 5.000000e-01 : f32
    %4 = vector.broadcast %cst_1 : f32 to vector<16x128xf32>
    %5 = arith.mulf %4, %3 : vector<16x128xf32>
    %cst_2 = arith.constant 5.000000e-01 : f32
    %6 = vector.broadcast %cst_2 : f32 to vector<16x128xf32>
    %7 = arith.addf %6, %5 : vector<16x128xf32>
    %cst_3 = arith.constant -5.000000e-01 : f32
    %8 = vector.broadcast %cst_3 : f32 to vector<16x128xf32>
    %9 = arith.mulf %8, %0 : vector<16x128xf32>
    %10 = arith.mulf %9, %0 : vector<16x128xf32>
    %11 = math.exp %10 : vector<16x128xf32>
    %cst_4 = arith.constant 0.398942292 : f32
    %12 = vector.broadcast %cst_4 : f32 to vector<16x128xf32>
    %13 = arith.mulf %12, %11 : vector<16x128xf32>
    %14 = arith.mulf %0, %13 : vector<16x128xf32>
    %15 = arith.addf %7, %14 : vector<16x128xf32>
    %c0_5 = arith.constant 0 : index
    %c0_6 = arith.constant 0 : index
    %16 = vector.load %arg2[%c0_5, %c0_6] : memref<16x128xf32, #tpu.memory_space<vmem>>, vector<16x128xf32>
    tpu.vector_store %arg2[%c0_5, %c0_6], %15 {strides = array<i32>} : memref<16x128xf32, #tpu.memory_space<vmem>>, vector<16x128xf32>,
    return
  }
  func.func @transform_0(%arg0: i32) -> (i32, i32) {
    %c0_i32 = arith.constant 0 : i32
    %c0_i32_0 = arith.constant 0 : i32
    return %arg0, %c0_i32 : i32, i32
  }
  func.func @transform_1(%arg0: i32) -> (i32, i32) {
    %c0_i32 = arith.constant 0 : i32
    %c0_i32_0 = arith.constant 0 : i32
    return %arg0, %c0_i32 : i32, i32
  }
}

</mosaic_0001>

<llo_original>
// kernel: tpu_custom_call.1
$region0: #{tpu_custom_call.1}
  #allocation0 [shape = 'u32[]', space=smem, size = 0x4, offset = 0x4, fixed_abs, tag = 'smem constant byte address 0x4 - core index']
  #allocation1 [shape = 'u32[144,128]{1,0:T(1,128)}', space=vmem, size = 0x12000, scoped, tag = 'internal scratch']
  %s0 = inlined_call_operand.hbm [shape: f32[16,128], index: 0, kind: input, shape index: {}]
  %s1 = inlined_call_operand.hbm [shape: f32[16,128], index: 1, kind: output, shape index: {}]
  %s2 = sld [smem:[#allocation0]]
  $region18: #{tpu_custom_call.1} parent=0
    _
  %s4 = ssub.s32 1, %s2
  %s5 = scalar_select 0, %s4, %s2
  $region1: #{tpu_custom_call.1} parent=0
    #allocation2 [shape = 'u8[8192]{0}', space=vmem, size = 0x2000, scoped, tag = 'input window, operand 0, single buffered']
    #allocation3 [shape = 's32[1]{0}', space=sflag, size = 0x4, scoped, tag = 'scoped memory for tpu_custom_call.1']
    #allocation4 [shape = 's32[1]{0}', space=sflag, size = 0x4, scoped, tag = 'scoped memory for tpu_custom_call.1']
    #allocation5 [shape = 'u8[8192]{0}', space=vmem, size = 0x2000, scoped, tag = 'output window, operand 0, single buffered']
    %6 = vsyncpa [#allocation3], 0
    %7 = vsyncpa [#allocation4], 0
    // Predicated region
    $region2: #{tpu_custom_call.1} parent=1 // pred_check
      _
    $region3: #{tpu_custom_call.1} parent=1 // pred_check_branch
      %9 = sbr.rel (0) target = $region5
    $region4: #{tpu_custom_call.1} parent=1 // pred_region
      %s11 = ssub.s32 256, 256
      %12 = vsyncadd [#allocation3], %s11
      %s13 = sshll.u32 [#allocation2], 4
      %s14 = int_to_ptr.vmem [resolvable:$true] %s13
      %19 = dma.hbm_to_vmem [thread:$0]  %s0, 256, %s14, [#allocation3], 128, 128, 8
    $region5: #{tpu_custom_call.1} parent=1 // pred_fallthru
      _
    // Predicated region
    $region6: #{tpu_custom_call.1} parent=1 // pred_check
      _
    $region7: #{tpu_custom_call.1} parent=1 // pred_check_branch
      %21 = sbr.rel (0) target = $region9
    $region8: #{tpu_custom_call.1} parent=1 // pred_region
      %22 = dma.done [#allocation3], 256
    $region9: #{tpu_custom_call.1} parent=1 // pred_fallthru
      _
    %v23 = vld [vmem:[#allocation2] sm:$0xff]
    %v24 = vld [vmem:[#allocation2 + $0x8] sm:$0xff]
    %v25 = vmul.f32 %v23, 0.70710677
    %v26 = vmul.f32 %v24, 0.70710677
    %v27 = verf.f32.pop %v25
    %v28 = verf.f32.pop %v26
    %v29 = vmul.f32 %v27, 0.5
    %v30 = vmul.f32 %v28, 0.5
    %v31 = vadd.f32 %v29, 0.5
    %v32 = vadd.f32 %v30, 0.5
    %v33 = vmul.f32 %v23, -0.5
    %v34 = vmul.f32 %v24, -0.5
    %v35 = vmul.f32 %v33, %v23
    %v36 = vmul.f32 %v34, %v24
    %v37 = vmul.f32 %v35, 1.442695
    %v38 = vpow.pop %v37
    %v39 = vmul.f32 %v36, 1.442695
    %v40 = vpow.pop %v39
    %v41 = vmul.f32 %v38, 0.3989423
    %v42 = vmul.f32 %v40, 0.3989423
    %v43 = vmul.f32 %v23, %v41
    %v44 = vmul.f32 %v24, %v42
    %v45 = vadd.f32 %v31, %v43
    %v46 = vadd.f32 %v32, %v44
    %47 = vst [vmem:[#allocation5] sm:$0xff] %v45
    %48 = vst [vmem:[#allocation5 + $0x8] sm:$0xff] %v46
    // Predicated region
    $region10: #{tpu_custom_call.1} parent=1 // pred_check
      _
    $region11: #{tpu_custom_call.1} parent=1 // pred_check_branch
      %50 = sbr.rel (0) target = $region13
    $region12: #{tpu_custom_call.1} parent=1 // pred_region
      %s52 = ssub.s32 256, 256
      %53 = vsyncadd [#allocation4], %s52
      %s54 = sshll.u32 [#allocation5], 4
      %s55 = int_to_ptr.vmem [resolvable:$true] %s54
      %60 = dma.vmem_to_hbm [thread:$0]  %s55, 256, %s1, [#allocation4], 128, 128, 8
    $region13: #{tpu_custom_call.1} parent=1 // pred_fallthru
      _
    // Predicated region
    $region14: #{tpu_custom_call.1} parent=1 // pred_check
      _
    $region15: #{tpu_custom_call.1} parent=1 // pred_check_branch
      %62 = sbr.rel (0) target = $region17
    $region16: #{tpu_custom_call.1} parent=1 // pred_region
      %63 = dma.done [#allocation4], 256
    $region17: #{tpu_custom_call.1} parent=1 // pred_fallthru
      _
    %64 = vsyncpa [#allocation3], 1
    %65 = vsyncpa [#allocation4], 1

</llo_original>
